<compile_context>
chip_gen: v7x
topology: tpu7x:2x2x1
jax: 0.10.0
libtpu: 0.0.40
codegen_flags: <defaults>
</compile_context>

<pallas_src>
import jax
import jax.numpy as jnp
from jax import lax
from jax.experimental import pallas as pl
from jax.experimental.pallas import tpu as pltpu

# ---- model dimensions (small, TPU-lane friendly) --------------------------------------
B = 2            # batch
T = 16           # TEXT_LEN (sequence length)
D = 128          # INPUT_EMBEDDING_DIM (BERT hidden size stand-in)
G = 64           # GCN_OUTPUT_DIM
A = 5            # agent_num in Medical_Attention
A_PAD = 8        # agents padded to a sublane multiple
VOCAB = 1000
EPS = 1e-12


# ---- fused whole-batch kernel ----------------------------------------------------------
def feature_part_kernel(wf_ref, mask_ref, b1_ref, qattn_ref, gcn_w_ref, gcn_b_ref,
                        pool_w_ref, pool_b_ref, pool_out_ref, sent_out_ref):
    """Fused Medical_Attention + cosine adjacency + GCN + mean pooling + BERT pooler.

    wf_ref:     (B, T, D)      words_feature (q = k = v), f32
    mask_ref:   (B, T)         medical_term_mask as float
    b1_ref:     (A_PAD, T)     attention bias 1 (rows >= A are zero -> zero weight downstream)
    qattn_ref:  (T, A_PAD)     precomputed q_attn = softmax(b2) (cols >= A are zero), bf16
    gcn_w_ref:  (D, G) bf16    GCN weight
    gcn_b_ref:  (1, G) f32     GCN bias
    pool_w_ref: (D, D) bf16    BERT pooler weight
    pool_b_ref: (1, D) f32     BERT pooler bias
    pool_out_ref: (B, G) f32   mean-pooled GCN feature
    sent_out_ref: (B, D) f32   pooler output tanh(CLS @ Wp + bp)
    """
    b1 = b1_ref[...]
    q_attn = qattn_ref[...]
    gcn_w = gcn_w_ref[...]
    gcn_b = gcn_b_ref[...]
    pool_w = pool_w_ref[...]
    pool_b = pool_b_ref[...]

    pooled_rows = []
    cls_rows = []
    for b in range(B):                                   # static unroll over the tiny batch
        q = wf_ref[b]                                    # (T, D) f32
        q_bf = q.astype(jnp.bfloat16)
        mrow = mask_ref[pl.ds(b, 1), :].astype(jnp.bfloat16)             # (1, T)

        # agent token = mean over sequence of masked q == (mask_row @ q) / T
        agent = jnp.dot(mrow, q_bf, preferred_element_type=jnp.float32) * (1.0 / T)   # (1, D)

        # all agent rows are identical -> compute s_base once and sublane-broadcast + b1.
        s_base = lax.dot_general(agent.astype(jnp.bfloat16), q_bf,
                                 (((1,), (1,)), ((), ())),
                                 preferred_element_type=jnp.float32)                   # (1, T)
        # NOTE: max-subtraction skipped: logits are O(0.05) at the reference weight scales
        #       (std-0.02 biases, 0.02-scale embeddings); padded b1 rows are zero.
        e1 = jnp.exp(jnp.broadcast_to(s_base, (A_PAD, T)) + b1)                        # (8, T)
        agent_attn = e1 * pl.reciprocal(jnp.sum(e1, axis=-1, keepdims=True), approx=True)

        # q_attn = softmax(q @ agent_multi^T + b2) over agents == softmax(b2) exactly
        # (the data term is constant along the softmax axis) -> precomputed outside.

        # cosine adjacency fused with the mean pool:
        #   mean_rows(adj)[s] = mean_t(qn[t]) . qn[s],   qn = q / ||q||
        inv_norm = lax.rsqrt(jnp.sum(q * q, axis=-1, keepdims=True) + EPS)             # (T, 1)
        qn = q * inv_norm                                                              # (T, D)
        wvec = jnp.mean(qn, axis=0, keepdims=True).astype(jnp.bfloat16)                # (1, D)
        adj_mean = lax.dot_general(wvec, qn.astype(jnp.bfloat16),
                                   (((1,), (1,)), ((), ())),
                                   preferred_element_type=jnp.float32)                 # (1, T)

        # pooled_pre = adj_mean @ atten_x = ((adj_mean @ q_attn) @ agent_attn) @ q
        w1 = jnp.dot(adj_mean.astype(jnp.bfloat16), q_attn,
                     preferred_element_type=jnp.float32)                               # (1, 8)
        w2 = jnp.dot(w1.astype(jnp.bfloat16), agent_attn.astype(jnp.bfloat16),
                     preferred_element_type=jnp.float32)                               # (1, T)
        pooled_pre = jnp.dot(w2.astype(jnp.bfloat16), q_bf,
                             preferred_element_type=jnp.float32)                       # (1, D)

        pooled_rows.append(pooled_pre)
        cls_rows.append(q[0:1, :])                                                     # CLS row

    # batched tail: single (B,D)@(D,G) GCN projection and single (B,D)@(D,D) pooler matmul
    pooled_pre_all = jnp.concatenate(pooled_rows, axis=0).astype(jnp.bfloat16)         # (B, D)
    cls_all = jnp.concatenate(cls_rows, axis=0).astype(jnp.bfloat16)                   # (B, D)

    pool_out_ref[...] = jnp.dot(pooled_pre_all, gcn_w,
                                preferred_element_type=jnp.float32) + gcn_b            # (B, G)
    sent_out_ref[...] = jnp.tanh(jnp.dot(cls_all, pool_w,
                                         preferred_element_type=jnp.float32) + pool_b) # (B, D)


def feature_part_pallas(words_feature, medical_term_mask, b1_pad, q_attn_pad,
                        gcn_w_bf, gcn_b, pool_w_bf, pool_b):
    """Runs the fused kernel once for the whole batch.

    Returns (pool_feature (B,G), sentence_feature (B,D))."""
    mask = medical_term_mask.astype(jnp.float32)                                  # (B, T)
    vmem = pl.BlockSpec(memory_space=pltpu.MemorySpace.VMEM)
    pooled, sent = pl.pallas_call(
        feature_part_kernel,
        out_shape=(jax.ShapeDtypeStruct((B, G), jnp.float32),
                   jax.ShapeDtypeStruct((B, D), jnp.float32)),
        in_specs=[vmem] * 8,          # whole arrays resident in VMEM; no grid, no pipeline
        out_specs=(vmem, vmem),
    )(words_feature, mask, b1_pad, q_attn_pad, gcn_w_bf, gcn_b, pool_w_bf, pool_b)
    return pooled, sent


# ---- parameter construction (deterministic) --------------------------------------------
def make_params(key):
    k_emb, k_pw, k_b1, k_b2, k_gw = jax.random.split(key, 5)
    params = {}
    # BERT stand-in: embedding table + pooler projection
    params["emb"] = jax.random.normal(k_emb, (VOCAB, D), jnp.float32) * 0.02
    params["pool_w"] = jax.random.normal(k_pw, (D, D), jnp.float32) * 0.02
    params["pool_b"] = jnp.zeros((1, D), jnp.float32)
    # Medical_Attention biases: trunc_normal_(std=0.02)
    params["b1"] = jax.random.truncated_normal(k_b1, -2.0, 2.0, (A, T), jnp.float32) * 0.02
    params["b2"] = jax.random.truncated_normal(k_b2, -2.0, 2.0, (T, A), jnp.float32) * 0.02
    # GraphConvolution: kaiming_uniform weight, zero bias
    bound = jnp.sqrt(6.0 / D)
    params["gcn_w"] = jax.random.uniform(k_gw, (D, G), jnp.float32, -bound, bound)
    params["gcn_b"] = jnp.zeros((1, G), jnp.float32)

    # ---- kernel-ready precomputed tensors (built once, not per forward call) ----
    params["b1_pad"] = jnp.zeros((A_PAD, T), jnp.float32).at[:A, :].set(params["b1"])
    # q_attn = softmax(q @ agent_multi^T + b2, axis=-1) == softmax(b2, axis=-1) exactly,
    # because all agent rows are identical (constant shift along the softmax axis).
    qa = jax.nn.softmax(params["b2"], axis=-1)                                     # (T, A)
    params["q_attn_pad"] = (jnp.zeros((T, A_PAD), jnp.float32)
                            .at[:, :A].set(qa).astype(jnp.bfloat16))               # pad cols = 0
    params["gcn_w_bf"] = params["gcn_w"].astype(jnp.bfloat16)
    params["pool_w_bf"] = params["pool_w"].astype(jnp.bfloat16)
    return params


@jax.jit
def feature_part_forward(input_ids, attn_mask, medical_term_mask, params):
    # --- Feature_Extractor stand-in (glue, plain JAX) ---
    # TODO(synk): attn_mask is only consumed by the real BERT; the stub ignores it
    #             (mirrors the reference, where it never reaches Medical_Attention).
    del attn_mask
    words_feature = params["emb"][input_ids]                          # (B, T, D) last_hidden_state

    # --- Medical_Attention + cosine adjacency + GCN + Mean_Pooling + pooler (fused kernel) ---
    pool_feature, sentence_feature = feature_part_pallas(
        words_feature, medical_term_mask,
        params["b1_pad"], params["q_attn_pad"],
        params["gcn_w_bf"], params["gcn_b"],
        params["pool_w_bf"], params["pool_b"])

    # --- merge (kept outside the kernel so both kernel stores stay lane-aligned) ---
    merge_feature = jnp.concatenate([pool_feature, sentence_feature], axis=1)  # (B, G + D)
    return merge_feature


# ---- plain-JAX reference of the fused attention/GCN part (for numerical validation) -----
def feature_part_reference(words_feature, medical_term_mask, b1, b2, gcn_w, gcn_b):
    q = words_feature.astype(jnp.float32)
    mask = medical_term_mask.astype(jnp.float32)[..., None]           # (B, T, 1)
    mask_q = q * mask
    agent = jnp.mean(mask_q, axis=1, keepdims=True)                   # (B, 1, D)
    agent_multi = jnp.broadcast_to(agent, (q.shape[0], A, q.shape[2]))
    s1 = jnp.einsum("bad,btd->bat", agent_multi, q) + b1
    agent_attn = jax.nn.softmax(s1, axis=-1)
    agent_v = jnp.einsum("bat,btd->bad", agent_attn, q)
    s2 = jnp.einsum("btd,bad->bta", q, agent_multi) + b2
    q_attn = jax.nn.softmax(s2, axis=-1)
    atten_x = jnp.einsum("bta,bad->btd", q_attn, agent_v)
    norms = jnp.sqrt(jnp.sum(q * q, axis=-1, keepdims=True) + EPS)    # (B, T, 1)
    dots = jnp.einsum("btd,bsd->bts", q, q)
    adj = dots / (norms * jnp.swapaxes(norms, 1, 2))                  # cosine adjacency
    support = jnp.einsum("btd,dg->btg", atten_x, gcn_w)
    gcn = jnp.einsum("bts,bsg->btg", adj, support) + gcn_b
    return jnp.mean(gcn, axis=1)                                      # (B, G)


if __name__ == "__main__":
    key = jax.random.PRNGKey(0)
    k_params, k_ids, k_mmask = jax.random.split(key, 3)

    params = make_params(k_params)
    input_ids = jax.random.randint(k_ids, (B, T), 0, VOCAB, dtype=jnp.int32)
    attn_mask = jnp.ones((B, T), jnp.int32)
    medical_term_mask = (jax.random.uniform(k_mmask, (B, T)) > 0.5).astype(jnp.int32)

    out = feature_part_forward(input_ids, attn_mask, medical_term_mask, params)
    out = jax.block_until_ready(out)
    assert out.shape == (B, G + D), out.shape
    assert bool(jnp.all(jnp.isfinite(out)))

    # validate fused/factored kernel against the straightforward f32 reference
    words_feature = params["emb"][input_ids]
    pooled_ref = feature_part_reference(
        words_feature, medical_term_mask,
        params["b1"], params["b2"], params["gcn_w"], params["gcn_b"])
    sentence_ref = jnp.tanh(words_feature[:, 0, :] @ params["pool_w"] + params["pool_b"])
    ref = jnp.concatenate([pooled_ref, sentence_ref], axis=1)
    # expected deviation ~5e-4: bf16 MXU operands (f32 accumulation) + approx reciprocal
    max_err = float(jnp.max(jnp.abs(out - ref)))
    assert max_err < 3e-3, f"kernel/reference mismatch: {max_err}"

    print("KERNEL_OK")
</pallas_src>

<mosaic_0001>
module attributes {stable_mosaic.version = 11 : i64} {
  func.func @feature_part_kernel(%arg0: memref<2x16x128xf32, #tpu.memory_space<vmem>>, %arg1: memref<2x16xf32, #tpu.memory_space<vmem>>, %arg2: memref<8x16xf32, #tpu.memory_space<vmem>>, %arg3: memref<16x8xbf16, #tpu.memory_space<vmem>>, %arg4: memref<128x64xbf16, #tpu.memory_space<vmem>>, %arg5: memref<1x64xf32, #tpu.memory_space<vmem>>, %arg6: memref<128x128xbf16, #tpu.memory_space<vmem>>, %arg7: memref<1x128xf32, #tpu.memory_space<vmem>>, %arg8: memref<2x64xf32, #tpu.memory_space<vmem>>, %arg9: memref<2x128xf32, #tpu.memory_space<vmem>>) attributes {dimension_semantics = [], scalar_prefetch = 0 : i64, scratch_operands = 0 : i64, tpu.core_type = #tpu.core_type<tc>} {
    %c0 = arith.constant 0 : index
    %c0_0 = arith.constant 0 : index
    %0 = vector.load %arg2[%c0, %c0_0] : memref<8x16xf32, #tpu.memory_space<vmem>>, vector<8x16xf32>
    %c0_1 = arith.constant 0 : index
    %c0_2 = arith.constant 0 : index
    %1 = vector.load %arg3[%c0_1, %c0_2] : memref<16x8xbf16, #tpu.memory_space<vmem>>, vector<16x8xbf16>
    %c0_3 = arith.constant 0 : index
    %c0_4 = arith.constant 0 : index
    %2 = vector.load %arg4[%c0_3, %c0_4] : memref<128x64xbf16, #tpu.memory_space<vmem>>, vector<128x64xbf16>
    %c0_5 = arith.constant 0 : index
    %c0_6 = arith.constant 0 : index
    %3 = vector.load %arg5[%c0_5, %c0_6] : memref<1x64xf32, #tpu.memory_space<vmem>>, vector<1x64xf32>
    %c0_7 = arith.constant 0 : index
    %c0_8 = arith.constant 0 : index
    %4 = vector.load %arg6[%c0_7, %c0_8] : memref<128x128xbf16, #tpu.memory_space<vmem>>, vector<128x128xbf16>
    %c0_9 = arith.constant 0 : index
    %c0_10 = arith.constant 0 : index
    %5 = vector.load %arg7[%c0_9, %c0_10] : memref<1x128xf32, #tpu.memory_space<vmem>>, vector<1x128xf32>
    %c0_11 = arith.constant 0 : index
    %c0_12 = arith.constant 0 : index
    %c0_13 = arith.constant 0 : index
    %6 = vector.load %arg0[%c0_11, %c0_12, %c0_13] : memref<2x16x128xf32, #tpu.memory_space<vmem>>, vector<1x16x128xf32>
    %7 = vector.shape_cast %6 : vector<1x16x128xf32> to vector<16x128xf32>
    %8 = arith.truncf %7 : vector<16x128xf32> to vector<16x128xbf16>
    %c0_14 = arith.constant 0 : index
    %c0_15 = arith.constant 0 : index
    %9 = vector.load %arg1[%c0_14, %c0_15] : memref<2x16xf32, #tpu.memory_space<vmem>>, vector<1x16xf32>
    %10 = arith.truncf %9 : vector<1x16xf32> to vector<1x16xbf16>
    %cst = arith.constant dense<0.000000e+00> : vector<1x128xf32>
    %11 = tpu.matmul %10, %8, %cst {dimension_numbers = #tpu.dot_dimension_numbers<[1], [0], [0], [1], [0, 0, 1, 1], [], []>} : vector<1x16xbf16>, vector<16x128xbf16>, vector<1x128xf32> -> vector<1x128xf32>
    %cst_16 = arith.constant 6.250000e-02 : f32
    %12 = vector.broadcast %cst_16 : f32 to vector<1x128xf32>
    %13 = arith.mulf %11, %12 : vector<1x128xf32>
    %14 = arith.truncf %13 : vector<1x128xf32> to vector<1x128xbf16>
    %cst_17 = arith.constant dense<0.000000e+00> : vector<1x16xf32>
    %15 = tpu.matmul %14, %8, %cst_17 {dimension_numbers = #tpu.dot_dimension_numbers<[1], [1], [0], [0], [0, 0, 1, 0], [], []>} : vector<1x128xbf16>, vector<16x128xbf16>, vector<1x16xf32> -> vector<1x16xf32>
    %16 = vector.shape_cast %15 : vector<1x16xf32> to vector<1x16xf32>
    %17 = vector.broadcast %16 : vector<1x16xf32> to vector<8x16xf32>
    %18 = arith.addf %17, %0 : vector<8x16xf32>
    %19 = math.exp %18 : vector<8x16xf32>
    %cst_18 = arith.constant dense<0.000000e+00> : vector<8xf32>
    %20 = vector.multi_reduction <add>, %19, %cst_18 [1] : vector<8x16xf32> to vector<8xf32>
    %21 = vector.shape_cast %20 : vector<8xf32> to vector<8x1xf32>
    %22 = tpu.reciprocal %21 {approx = true} : vector<8x1xf32> -> vector<8x1xf32>
    %23 = vector.broadcast %22 : vector<8x1xf32> to vector<8x16xf32>
    %24 = arith.mulf %19, %23 : vector<8x16xf32>
    %25 = arith.mulf %7, %7 : vector<16x128xf32>
    %cst_19 = arith.constant dense<0.000000e+00> : vector<16xf32>
    %26 = vector.multi_reduction <add>, %25, %cst_19 [1] : vector<16x128xf32> to vector<16xf32>
    %27 = vector.shape_cast %26 : vector<16xf32> to vector<16x1xf32>
    %cst_20 = arith.constant 9.99999996E-13 : f32
    %28 = vector.broadcast %cst_20 : f32 to vector<16x1xf32>
    %29 = arith.addf %27, %28 : vector<16x1xf32>
    %30 = math.rsqrt %29 : vector<16x1xf32>
    %31 = vector.broadcast %30 : vector<16x1xf32> to vector<16x128xf32>
    %32 = arith.mulf %7, %31 : vector<16x128xf32>
    %cst_21 = arith.constant dense<0.000000e+00> : vector<128xf32>
    %33 = vector.multi_reduction <add>, %32, %cst_21 [0] : vector<16x128xf32> to vector<128xf32>
    %34 = vector.shape_cast %33 : vector<128xf32> to vector<1x128xf32>
    %cst_22 = arith.constant 1.600000e+01 : f32
    %35 = vector.broadcast %cst_22 : f32 to vector<1x128xf32>
    %36 = arith.divf %34, %35 : vector<1x128xf32>
    %37 = arith.truncf %36 : vector<1x128xf32> to vector<1x128xbf16>
    %38 = arith.truncf %32 : vector<16x128xf32> to vector<16x128xbf16>
    %cst_23 = arith.constant dense<0.000000e+00> : vector<1x16xf32>
    %39 = tpu.matmul %37, %38, %cst_23 {dimension_numbers = #tpu.dot_dimension_numbers<[1], [1], [0], [0], [0, 0, 1, 0], [], []>} : vector<1x128xbf16>, vector<16x128xbf16>, vector<1x16xf32> -> vector<1x16xf32>
    %40 = arith.truncf %39 : vector<1x16xf32> to vector<1x16xbf16>
    %cst_24 = arith.constant dense<0.000000e+00> : vector<1x8xf32>
    %41 = tpu.matmul %40, %1, %cst_24 {dimension_numbers = #tpu.dot_dimension_numbers<[1], [0], [0], [1], [0, 0, 1, 1], [], []>} : vector<1x16xbf16>, vector<16x8xbf16>, vector<1x8xf32> -> vector<1x8xf32>
    %42 = arith.truncf %41 : vector<1x8xf32> to vector<1x8xbf16>
    %43 = arith.truncf %24 : vector<8x16xf32> to vector<8x16xbf16>
    %cst_25 = arith.constant dense<0.000000e+00> : vector<1x16xf32>
    %44 = tpu.matmul %42, %43, %cst_25 {dimension_numbers = #tpu.dot_dimension_numbers<[1], [0], [0], [1], [0, 0, 1, 1], [], []>} : vector<1x8xbf16>, vector<8x16xbf16>, vector<1x16xf32> -> vector<1x16xf32>
    %45 = arith.truncf %44 : vector<1x16xf32> to vector<1x16xbf16>
    %cst_26 = arith.constant dense<0.000000e+00> : vector<1x128xf32>
    %46 = tpu.matmul %45, %8, %cst_26 {dimension_numbers = #tpu.dot_dimension_numbers<[1], [0], [0], [1], [0, 0, 1, 1], [], []>} : vector<1x16xbf16>, vector<16x128xbf16>, vector<1x128xf32> -> vector<1x128xf32>
    %47 = vector.extract_strided_slice %7 {offsets = [0, 0], sizes = [1, 128], strides = [1, 1]} : vector<16x128xf32> to vector<1x128xf32>
    %c1 = arith.constant 1 : index
    %c0_27 = arith.constant 0 : index
    %c0_28 = arith.constant 0 : index
    %48 = vector.load %arg0[%c1, %c0_27, %c0_28] : memref<2x16x128xf32, #tpu.memory_space<vmem>>, vector<1x16x128xf32>
    %49 = vector.shape_cast %48 : vector<1x16x128xf32> to vector<16x128xf32>
    %50 = arith.truncf %49 : vector<16x128xf32> to vector<16x128xbf16>
    %c1_29 = arith.constant 1 : index
    %c0_30 = arith.constant 0 : index
    %51 = vector.load %arg1[%c1_29, %c0_30] : memref<2x16xf32, #tpu.memory_space<vmem>>, vector<1x16xf32>
    %52 = arith.truncf %51 : vector<1x16xf32> to vector<1x16xbf16>
    %cst_31 = arith.constant dense<0.000000e+00> : vector<1x128xf32>
    %53 = tpu.matmul %52, %50, %cst_31 {dimension_numbers = #tpu.dot_dimension_numbers<[1], [0], [0], [1], [0, 0, 1, 1], [], []>} : vector<1x16xbf16>, vector<16x128xbf16>, vector<1x128xf32> -> vector<1x128xf32>
    %cst_32 = arith.constant 6.250000e-02 : f32
    %54 = vector.broadcast %cst_32 : f32 to vector<1x128xf32>
    %55 = arith.mulf %53, %54 : vector<1x128xf32>
    %56 = arith.truncf %55 : vector<1x128xf32> to vector<1x128xbf16>
    %cst_33 = arith.constant dense<0.000000e+00> : vector<1x16xf32>
    %57 = tpu.matmul %56, %50, %cst_33 {dimension_numbers = #tpu.dot_dimension_numbers<[1], [1], [0], [0], [0, 0, 1, 0], [], []>} : vector<1x128xbf16>, vector<16x128xbf16>, vector<1x16xf32> -> vector<1x16xf32>
    %58 = vector.shape_cast %57 : vector<1x16xf32> to vector<1x16xf32>
    %59 = vector.broadcast %58 : vector<1x16xf32> to vector<8x16xf32>
    %60 = arith.addf %59, %0 : vector<8x16xf32>
    %61 = math.exp %60 : vector<8x16xf32>
    %cst_34 = arith.constant dense<0.000000e+00> : vector<8xf32>
    %62 = vector.multi_reduction <add>, %61, %cst_34 [1] : vector<8x16xf32> to vector<8xf32>
    %63 = vector.shape_cast %62 : vector<8xf32> to vector<8x1xf32>
    %64 = tpu.reciprocal %63 {approx = true} : vector<8x1xf32> -> vector<8x1xf32>
    %65 = vector.broadcast %64 : vector<8x1xf32> to vector<8x16xf32>
    %66 = arith.mulf %61, %65 : vector<8x16xf32>
    %67 = arith.mulf %49, %49 : vector<16x128xf32>
    %cst_35 = arith.constant dense<0.000000e+00> : vector<16xf32>
    %68 = vector.multi_reduction <add>, %67, %cst_35 [1] : vector<16x128xf32> to vector<16xf32>
    %69 = vector.shape_cast %68 : vector<16xf32> to vector<16x1xf32>
    %cst_36 = arith.constant 9.99999996E-13 : f32
    %70 = vector.broadcast %cst_36 : f32 to vector<16x1xf32>
    %71 = arith.addf %69, %70 : vector<16x1xf32>
    %72 = math.rsqrt %71 : vector<16x1xf32>
    %73 = vector.broadcast %72 : vector<16x1xf32> to vector<16x128xf32>
    %74 = arith.mulf %49, %73 : vector<16x128xf32>
    %cst_37 = arith.constant dense<0.000000e+00> : vector<128xf32>
    %75 = vector.multi_reduction <add>, %74, %cst_37 [0] : vector<16x128xf32> to vector<128xf32>
    %76 = vector.shape_cast %75 : vector<128xf32> to vector<1x128xf32>
    %cst_38 = arith.constant 1.600000e+01 : f32
    %77 = vector.broadcast %cst_38 : f32 to vector<1x128xf32>
    %78 = arith.divf %76, %77 : vector<1x128xf32>
    %79 = arith.truncf %78 : vector<1x128xf32> to vector<1x128xbf16>
    %80 = arith.truncf %74 : vector<16x128xf32> to vector<16x128xbf16>
    %cst_39 = arith.constant dense<0.000000e+00> : vector<1x16xf32>
    %81 = tpu.matmul %79, %80, %cst_39 {dimension_numbers = #tpu.dot_dimension_numbers<[1], [1], [0], [0], [0, 0, 1, 0], [], []>} : vector<1x128xbf16>, vector<16x128xbf16>, vector<1x16xf32> -> vector<1x16xf32>
    %82 = arith.truncf %81 : vector<1x16xf32> to vector<1x16xbf16>
    %cst_40 = arith.constant dense<0.000000e+00> : vector<1x8xf32>
    %83 = tpu.matmul %82, %1, %cst_40 {dimension_numbers = #tpu.dot_dimension_numbers<[1], [0], [0], [1], [0, 0, 1, 1], [], []>} : vector<1x16xbf16>, vector<16x8xbf16>, vector<1x8xf32> -> vector<1x8xf32>
    %84 = arith.truncf %83 : vector<1x8xf32> to vector<1x8xbf16>
    %85 = arith.truncf %66 : vector<8x16xf32> to vector<8x16xbf16>
    %cst_41 = arith.constant dense<0.000000e+00> : vector<1x16xf32>
    %86 = tpu.matmul %84, %85, %cst_41 {dimension_numbers = #tpu.dot_dimension_numbers<[1], [0], [0], [1], [0, 0, 1, 1], [], []>} : vector<1x8xbf16>, vector<8x16xbf16>, vector<1x16xf32> -> vector<1x16xf32>
    %87 = arith.truncf %86 : vector<1x16xf32> to vector<1x16xbf16>
    %cst_42 = arith.constant dense<0.000000e+00> : vector<1x128xf32>
    %88 = tpu.matmul %87, %50, %cst_42 {dimension_numbers = #tpu.dot_dimension_numbers<[1], [0], [0], [1], [0, 0, 1, 1], [], []>} : vector<1x16xbf16>, vector<16x128xbf16>, vector<1x128xf32> -> vector<1x128xf32>
    %89 = vector.extract_strided_slice %49 {offsets = [0, 0], sizes = [1, 128], strides = [1, 1]} : vector<16x128xf32> to vector<1x128xf32>
    %90 = tpu.concatenate %46, %88 in 0 : vector<1x128xf32>, vector<1x128xf32> -> vector<2x128xf32>
    %91 = arith.truncf %90 : vector<2x128xf32> to vector<2x128xbf16>
    %92 = tpu.concatenate %47, %89 in 0 : vector<1x128xf32>, vector<1x128xf32> -> vector<2x128xf32>
    %93 = arith.truncf %92 : vector<2x128xf32> to vector<2x128xbf16>
    %cst_43 = arith.constant dense<0.000000e+00> : vector<2x64xf32>
    %94 = tpu.matmul %91, %2, %cst_43 {dimension_numbers = #tpu.dot_dimension_numbers<[1], [0], [0], [1], [0, 0, 1, 1], [], []>} : vector<2x128xbf16>, vector<128x64xbf16>, vector<2x64xf32> -> vector<2x64xf32>
    %95 = vector.broadcast %3 : vector<1x64xf32> to vector<2x64xf32>
    %96 = arith.addf %94, %95 : vector<2x64xf32>
    %c0_44 = arith.constant 0 : index
    %c0_45 = arith.constant 0 : index
    %97 = vector.load %arg8[%c0_44, %c0_45] : memref<2x64xf32, #tpu.memory_space<vmem>>, vector<2x64xf32>
    tpu.vector_store %arg8[%c0_44, %c0_45], %96 {strides = array<i32>} : memref<2x64xf32, #tpu.memory_space<vmem>>, vector<2x64xf32>,
    %cst_46 = arith.constant dense<0.000000e+00> : vector<2x128xf32>
    %98 = tpu.matmul %93, %4, %cst_46 {dimension_numbers = #tpu.dot_dimension_numbers<[1], [0], [0], [1], [0, 0, 1, 1], [], []>} : vector<2x128xbf16>, vector<128x128xbf16>, vector<2x128xf32> -> vector<2x128xf32>
    %99 = vector.broadcast %5 : vector<1x128xf32> to vector<2x128xf32>
    %100 = arith.addf %98, %99 : vector<2x128xf32>
    %101 = math.tanh %100 : vector<2x128xf32>
    %c0_47 = arith.constant 0 : index
    %c0_48 = arith.constant 0 : index
    %102 = vector.load %arg9[%c0_47, %c0_48] : memref<2x128xf32, #tpu.memory_space<vmem>>, vector<2x128xf32>
    tpu.vector_store %arg9[%c0_47, %c0_48], %101 {strides = array<i32>} : memref<2x128xf32, #tpu.memory_space<vmem>>, vector<2x128xf32>,
    return
  }
}

</mosaic_0001>

<llo_original>
// kernel: feature_part_forward.1
$region0: #{feature_part_forward.1}
  #allocation0 [shape = 'u32[]', space=smem, size = 0x4, offset = 0x4, fixed_abs, tag = 'smem constant byte address 0x4 - core index']
  #allocation1 [shape = 'u32[144,128]{1,0:T(1,128)}', space=vmem, size = 0x12000, scoped, tag = 'internal scratch']
  %s0 = inlined_call_operand.vmem [shape: f32[2,16,128], index: 0, kind: input, shape index: {}]
  %s1 = inlined_call_operand.vmem [shape: f32[2,16], index: 1, kind: input, shape index: {}]
  %s2 = inlined_call_operand.vmem [shape: f32[8,16], index: 2, kind: input, shape index: {}]
  %s3 = inlined_call_operand.vmem [shape: bf16[16,8], index: 3, kind: input, shape index: {}]
  %s4 = inlined_call_operand.vmem [shape: bf16[128,64], index: 4, kind: input, shape index: {}]
  %s5 = inlined_call_operand.vmem [shape: f32[1,64], index: 5, kind: input, shape index: {}]
  %s6 = inlined_call_operand.vmem [shape: bf16[128,128], index: 6, kind: input, shape index: {}]
  %s7 = inlined_call_operand.vmem [shape: f32[1,128], index: 7, kind: input, shape index: {}]
  %s8 = inlined_call_operand.vmem [shape: f32[2,64], index: 8, kind: output, shape index: {0}]
  %s9 = inlined_call_operand.vmem [shape: f32[2,128], index: 9, kind: output, shape index: {1}]
  %10 = xla_tuple %s8, %s9
  %s11 = sld [smem:[#allocation0]]
  $region50: #{feature_part_forward.1} parent=0
    _
  %s13 = ssub.s32 1, %s11
  %s14 = scalar_select 0, %s13, %s11
  // Predicated region
  $region2: #{feature_part_forward.1} parent=0 // pred_check
    _
  $region3: #{feature_part_forward.1} parent=0 // pred_check_branch
    %16 = sbr.rel (0) target = $region5
  $region4: #{feature_part_forward.1} parent=0 // pred_region
    _
  $region5: #{feature_part_forward.1} parent=0 // pred_fallthru
    _
  // Predicated region
  $region6: #{feature_part_forward.1} parent=0 // pred_check
    _
  $region7: #{feature_part_forward.1} parent=0 // pred_check_branch
    %18 = sbr.rel (0) target = $region9
  $region8: #{feature_part_forward.1} parent=0 // pred_region
    _
  $region9: #{feature_part_forward.1} parent=0 // pred_fallthru
    _
  // Predicated region
  $region10: #{feature_part_forward.1} parent=0 // pred_check
    _
  $region11: #{feature_part_forward.1} parent=0 // pred_check_branch
    %20 = sbr.rel (0) target = $region13
  $region12: #{feature_part_forward.1} parent=0 // pred_region
    _
  $region13: #{feature_part_forward.1} parent=0 // pred_fallthru
    _
  // Predicated region
  $region14: #{feature_part_forward.1} parent=0 // pred_check
    _
  $region15: #{feature_part_forward.1} parent=0 // pred_check_branch
    %22 = sbr.rel (0) target = $region17
  $region16: #{feature_part_forward.1} parent=0 // pred_region
    _
  $region17: #{feature_part_forward.1} parent=0 // pred_fallthru
    _
  // Predicated region
  $region18: #{feature_part_forward.1} parent=0 // pred_check
    _
  $region19: #{feature_part_forward.1} parent=0 // pred_check_branch
    %24 = sbr.rel (0) target = $region21
  $region20: #{feature_part_forward.1} parent=0 // pred_region
    _
  $region21: #{feature_part_forward.1} parent=0 // pred_fallthru
    _
  // Predicated region
  $region22: #{feature_part_forward.1} parent=0 // pred_check
    _
  $region23: #{feature_part_forward.1} parent=0 // pred_check_branch
    %26 = sbr.rel (0) target = $region25
  $region24: #{feature_part_forward.1} parent=0 // pred_region
    _
  $region25: #{feature_part_forward.1} parent=0 // pred_fallthru
    _
  // Predicated region
  $region26: #{feature_part_forward.1} parent=0 // pred_check
    _
  $region27: #{feature_part_forward.1} parent=0 // pred_check_branch
    %28 = sbr.rel (0) target = $region29
  $region28: #{feature_part_forward.1} parent=0 // pred_region
    _
  $region29: #{feature_part_forward.1} parent=0 // pred_fallthru
    _
  // Predicated region
  $region30: #{feature_part_forward.1} parent=0 // pred_check
    _
  $region31: #{feature_part_forward.1} parent=0 // pred_check_branch
    %30 = sbr.rel (0) target = $region33
  $region32: #{feature_part_forward.1} parent=0 // pred_region
    _
  $region33: #{feature_part_forward.1} parent=0 // pred_fallthru
    _
  %v32 = vld [vmem:[%s2] sm:$0xff]
  %v33 = vld [vmem:[%s3] sm:$0xf]
  %v34 = vld [vmem:[%s3 + $0x4] sm:$0xf]
  %v35 = vld [vmem:[%s4] sm:$0xf]
  %v36 = vld [vmem:[%s4 + $0x4] sm:$0xf]
  %v37 = vld [vmem:[%s4 + $0x8] sm:$0xf]
  %v38 = vld [vmem:[%s4 + $0xc] sm:$0xf]
  %v39 = vld [vmem:[%s4 + $0x10] sm:$0xf]
  %v40 = vld [vmem:[%s4 + $0x14] sm:$0xf]
  %v41 = vld [vmem:[%s4 + $0x18] sm:$0xf]
  %v42 = vld [vmem:[%s4 + $0x1c] sm:$0xf]
  %v43 = vld [vmem:[%s4 + $0x20] sm:$0xf]
  %v44 = vld [vmem:[%s4 + $0x24] sm:$0xf]
  %v45 = vld [vmem:[%s4 + $0x28] sm:$0xf]
  %v46 = vld [vmem:[%s4 + $0x2c] sm:$0xf]
  %v47 = vld [vmem:[%s4 + $0x30] sm:$0xf]
  %v48 = vld [vmem:[%s4 + $0x34] sm:$0xf]
  %v49 = vld [vmem:[%s4 + $0x38] sm:$0xf]
  %v50 = vld [vmem:[%s4 + $0x3c] sm:$0xf]
  %v51 = vld [vmem:[%s5] sm:$0x1]
  %v52 = vld [vmem:[%s6] sm:$0xf]
  %v53 = vld [vmem:[%s6 + $0x4] sm:$0xf]
  %v54 = vld [vmem:[%s6 + $0x8] sm:$0xf]
  %v55 = vld [vmem:[%s6 + $0xc] sm:$0xf]
  %v56 = vld [vmem:[%s6 + $0x10] sm:$0xf]
  %v57 = vld [vmem:[%s6 + $0x14] sm:$0xf]
  %v58 = vld [vmem:[%s6 + $0x18] sm:$0xf]
  %v59 = vld [vmem:[%s6 + $0x1c] sm:$0xf]
  %v60 = vld [vmem:[%s6 + $0x20] sm:$0xf]
  %v61 = vld [vmem:[%s6 + $0x24] sm:$0xf]
  %v62 = vld [vmem:[%s6 + $0x28] sm:$0xf]
  %v63 = vld [vmem:[%s6 + $0x2c] sm:$0xf]
  %v64 = vld [vmem:[%s6 + $0x30] sm:$0xf]
  %v65 = vld [vmem:[%s6 + $0x34] sm:$0xf]
  %v66 = vld [vmem:[%s6 + $0x38] sm:$0xf]
  %v67 = vld [vmem:[%s6 + $0x3c] sm:$0xf]
  %v68 = vld [vmem:[%s7] sm:$0x1]
  %v69 = vld [vmem:[%s0] sm:$0xff]
  %v70 = vld [vmem:[%s0 + $0x8] sm:$0xff]
  %v71 = vpack.c.bf16 %v70, %v69
  %v72 = vld [vmem:[%s1] sm:$0x1]
  %v73 = vpack.c.bf16 %v72, %v72
  %vm74 = vcmask 130048
  %v76 = vsel %vm74, %v73, 0
  %78 = vmatprep.subr.bf16.mxu0 0
  %79 = vmatpush1.bf16.msra.mxu0 %v71
  %80 = vmatprep.subr.bf16.mxu0 0
  %81 = vmatpush1.bf16.msra.mxu0 0
  %82 = vmatprep.subr.bf16.mxu0 0
  %83 = vmatpush1.bf16.msra.mxu0 0
  %84 = vmatprep.subr.bf16.mxu0 0
  %85 = vmatpush1.bf16.msra.mxu0 0
  %86 = vmatprep.subr.bf16.mxu0 0
  %87 = vmatpush1.bf16.msra.mxu0 0
  %88 = vmatprep.subr.bf16.mxu0 0
  %89 = vmatpush1.bf16.msra.mxu0 0
  %90 = vmatprep.subr.bf16.mxu0 0
  %91 = vmatpush1.bf16.msra.mxu0 0
  %92 = vmatprep.subr.bf16.mxu0 0
  %93 = vmatpush1.bf16.msra.mxu0 0
  %94 = vmatprep.subr.bf16.mxu0 0
  %95 = vmatpush1.bf16.msra.mxu0 0
  %96 = vmatprep.subr.bf16.mxu0 0
  %97 = vmatpush1.bf16.msra.mxu0 0
  %98 = vmatprep.subr.bf16.mxu0 0
  %99 = vmatpush1.bf16.msra.mxu0 0
  %100 = vmatprep.subr.bf16.mxu0 0
  %101 = vmatpush1.bf16.msra.mxu0 0
  %102 = vmatprep.subr.bf16.mxu0 0
  %103 = vmatpush1.bf16.msra.mxu0 0
  %104 = vmatprep.subr.bf16.mxu0 0
  %105 = vmatpush1.bf16.msra.mxu0 0
  %106 = vmatprep.subr.bf16.mxu0 0
  %107 = vmatpush1.bf16.msra.mxu0 0
  %108 = vmatprep.subr.bf16.mxu0 0
  %109 = vmatpush1.bf16.msra.mxu0 0
  %110 = vmatprep.mubr.bf16.mxu0 0
  %111 = vmatmul.mubr.bf16.gmra.mrb[0].mxu0 %v76
  %v112 = vpop.f32.mrb[0].mxu0
  %v113 = vadd.f32 0.0, %v112
  %v114 = vpop.f32.mrb[0].mxu0
  %v115 = vpop.f32.mrb[0].mxu0
  %v116 = vpop.f32.mrb[0].mxu0
  %117 = vdwg.mxu0
  %v118 = vmul.f32 %v113, 0.0625
  %v119 = vpack.c.bf16 %v118, %v118
  %120 = vmatprep.subr.bf16.mxu0 0
  %121 = vmatpush1.bf16.xpose.msra.mxu0 %v71
  %122 = vmatprep.subr.bf16.mxu0 0
  %123 = vmatpush1.bf16.xpose.msra.mxu0 0
  %124 = vmatprep.subr.bf16.mxu0 0
  %125 = vmatpush1.bf16.xpose.msra.mxu0 0
  %126 = vmatprep.subr.bf16.mxu0 0
  %127 = vmatpush1.bf16.xpose.msra.mxu0 0
  %128 = vmatprep.subr.bf16.mxu0 0
  %129 = vmatpush1.bf16.xpose.msra.mxu0 0
  %130 = vmatprep.subr.bf16.mxu0 0
  %131 = vmatpush1.bf16.xpose.msra.mxu0 0
  %132 = vmatprep.subr.bf16.mxu0 0
  %133 = vmatpush1.bf16.xpose.msra.mxu0 0
  %134 = vmatprep.subr.bf16.mxu0 0
  %135 = vmatpush1.bf16.xpose.msra.mxu0 0
  %136 = vmatprep.subr.bf16.mxu0 0
  %137 = vmatpush1.bf16.xpose.msra.mxu0 0
  %138 = vmatprep.subr.bf16.mxu0 0
  %139 = vmatpush1.bf16.xpose.msra.mxu0 0
  %140 = vmatprep.subr.bf16.mxu0 0
  %141 = vmatpush1.bf16.xpose.msra.mxu0 0
  %142 = vmatprep.subr.bf16.mxu0 0
  %143 = vmatpush1.bf16.xpose.msra.mxu0 0
  %144 = vmatprep.subr.bf16.mxu0 0
  %145 = vmatpush1.bf16.xpose.msra.mxu0 0
  %146 = vmatprep.subr.bf16.mxu0 0
  %147 = vmatpush1.bf16.xpose.msra.mxu0 0
  %148 = vmatprep.subr.bf16.mxu0 0
  %149 = vmatpush1.bf16.xpose.msra.mxu0 0
  %150 = vmatprep.subr.bf16.mxu0 0
  %151 = vmatpush1.bf16.xpose.msra.mxu0 0
  %152 = vmatprep.mubr.bf16.mxu0 0
  %153 = vmatmul.mubr.bf16.gmra.mrb[0].mxu0 %v119
  %v154 = vpop.f32.mrb[0].mxu0
  %v155 = vadd.f32 0.0, %v154
  %v156 = vpop.f32.mrb[0].mxu0
  %v157 = vpop.f32.mrb[0].mxu0
  %v158 = vpop.f32.mrb[0].mxu0
  %159 = vdwg.mxu0
  %v160 = vlaneseq
  %v161 = vshrl.u32 %v160, 7
  %v162 = vsub.s32 0, %v161
  %v163 = vrot.slane %v155, %v162
  %v164 = vadd.f32 %v163, %v32
  %v165 = vmul.f32 %v164, 1.442695
  %v166 = vpow.pop %v165
  %v167 = vsel %vm74, %v166, 0.0
  %168 = vadd.xlane.f32.xlu0 %v167
  %v169 = vpop.xlane.xlu0 %168
  %v170 = vrcp.pop %v169
  %v171 = vmul.f32 %v166, %v170
  %v172 = vmul.f32 %v69, %v69
  %v173 = vmul.f32 %v70, %v70
  %174 = vadd.xlane.f32.xlu0 %v172
  %v175 = vpop.xlane.xlu0 %174
  %176 = vadd.xlane.f32.xlu0 %v173
  %v177 = vpop.xlane.xlu0 %176
  %v178 = vadd.f32 %v175, 1e-12
  %v179 = vadd.f32 %v177, 1e-12
  %v180 = vrsqrt.pop %v178
  %v181 = vrsqrt.pop %v179
  %v182 = vmul.f32 %v69, %v180
  %v183 = vmul.f32 %v70, %v181
  %v184 = vadd.f32 %v182, %v183
  %v185 = vrot.slane %v184, 4
  %v186 = vadd.f32 %v184, %v185
  %v187 = vrot.slane %v186, 2
  %v188 = vadd.f32 %v186, %v187
  %v189 = vrot.slane %v188, 1
  %v190 = vadd.f32 %v188, %v189
  %v191 = vrcp.pop 16.0
  %v192 = vmul.f32 %v190, %v191
  %v193 = vpack.c.bf16 %v192, %v192
  %v194 = vpack.c.bf16 %v183, %v182
  %195 = vmatprep.subr.bf16.mxu0 0
  %196 = vmatpush1.bf16.xpose.msra.mxu0 %v194
  %197 = vmatprep.subr.bf16.mxu0 0
  %198 = vmatpush1.bf16.xpose.msra.mxu0 0
  %199 = vmatprep.subr.bf16.mxu0 0
  %200 = vmatpush1.bf16.xpose.msra.mxu0 0
  %201 = vmatprep.subr.bf16.mxu0 0
  %202 = vmatpush1.bf16.xpose.msra.mxu0 0
  %203 = vmatprep.subr.bf16.mxu0 0
  %204 = vmatpush1.bf16.xpose.msra.mxu0 0
  %205 = vmatprep.subr.bf16.mxu0 0
  %206 = vmatpush1.bf16.xpose.msra.mxu0 0
  %207 = vmatprep.subr.bf16.mxu0 0
  %208 = vmatpush1.bf16.xpose.msra.mxu0 0
  %209 = vmatprep.subr.bf16.mxu0 0
  %210 = vmatpush1.bf16.xpose.msra.mxu0 0
  %211 = vmatprep.subr.bf16.mxu0 0
  %212 = vmatpush1.bf16.xpose.msra.mxu0 0
  %213 = vmatprep.subr.bf16.mxu0 0
  %214 = vmatpush1.bf16.xpose.msra.mxu0 0
  %215 = vmatprep.subr.bf16.mxu0 0
  %216 = vmatpush1.bf16.xpose.msra.mxu0 0
  %217 = vmatprep.subr.bf16.mxu0 0
  %218 = vmatpush1.bf16.xpose.msra.mxu0 0
  %219 = vmatprep.subr.bf16.mxu0 0
  %220 = vmatpush1.bf16.xpose.msra.mxu0 0
  %221 = vmatprep.subr.bf16.mxu0 0
  %222 = vmatpush1.bf16.xpose.msra.mxu0 0
  %223 = vmatprep.subr.bf16.mxu0 0
  %224 = vmatpush1.bf16.xpose.msra.mxu0 0
  %225 = vmatprep.subr.bf16.mxu0 0
  %226 = vmatpush1.bf16.xpose.msra.mxu0 0
  %227 = vmatprep.mubr.bf16.mxu0 0
  %228 = vmatmul.mubr.bf16.gmra.mrb[0].mxu0 %v193
  %v229 = vpop.f32.mrb[0].mxu0
  %v230 = vadd.f32 0.0, %v229
  %v231 = vpop.f32.mrb[0].mxu0
  %v232 = vpop.f32.mrb[0].mxu0
  %v233 = vpop.f32.mrb[0].mxu0
  %234 = vdwg.mxu0
  %v235 = vpack.c.bf16 %v230, %v230
  %v238 = vunpack.c.l.b16 %v33
  %v239 = vunpack.c.l.b16 %v34
  %v240 = vpack.c.b16 %v239, %v238
  %v243 = vsel %vm74, %v235, 0
  %245 = vmatprep.subr.bf16.mxu0 0
  %246 = vmatpush1.bf16.msra.mxu0 %v240
  %247 = vmatprep.subr.bf16.mxu0 0
  %248 = vmatpush1.bf16.msra.mxu0 0
  %249 = vmatprep.subr.bf16.mxu0 0
  %250 = vmatpush1.bf16.msra.mxu0 0
  %251 = vmatprep.subr.bf16.mxu0 0
  %252 = vmatpush1.bf16.msra.mxu0 0
  %253 = vmatprep.subr.bf16.mxu0 0
  %254 = vmatpush1.bf16.msra.mxu0 0
  %255 = vmatprep.subr.bf16.mxu0 0
  %256 = vmatpush1.bf16.msra.mxu0 0
  %257 = vmatprep.subr.bf16.mxu0 0
  %258 = vmatpush1.bf16.msra.mxu0 0
  %259 = vmatprep.subr.bf16.mxu0 0
  %260 = vmatpush1.bf16.msra.mxu0 0
  %261 = vmatprep.subr.bf16.mxu0 0
  %262 = vmatpush1.bf16.msra.mxu0 0
  %263 = vmatprep.subr.bf16.mxu0 0
  %264 = vmatpush1.bf16.msra.mxu0 0
  %265 = vmatprep.subr.bf16.mxu0 0
  %266 = vmatpush1.bf16.msra.mxu0 0
  %267 = vmatprep.subr.bf16.mxu0 0
  %268 = vmatpush1.bf16.msra.mxu0 0
  %269 = vmatprep.subr.bf16.mxu0 0
  %270 = vmatpush1.bf16.msra.mxu0 0
  %271 = vmatprep.subr.bf16.mxu0 0
  %272 = vmatpush1.bf16.msra.mxu0 0
  %273 = vmatprep.subr.bf16.mxu0 0
  %274 = vmatpush1.bf16.msra.mxu0 0
  %275 = vmatprep.subr.bf16.mxu0 0
  %276 = vmatpush1.bf16.msra.mxu0 0
  %277 = vmatprep.mubr.bf16.mxu0 0
  %278 = vmatmul.mubr.bf16.gmra.mrb[0].mxu0 %v243
  %v279 = vpop.f32.mrb[0].mxu0
  %v280 = vadd.f32 0.0, %v279
  %v281 = vpop.f32.mrb[0].mxu0
  %v282 = vpop.f32.mrb[0].mxu0
  %v283 = vpop.f32.mrb[0].mxu0
  %284 = vdwg.mxu0
  %v285 = vpack.c.bf16 %v280, %v280
  %v286 = vpack.c.bf16 %v171, %v171
  %vm287 = vcmask 64512
  %v289 = vsel %vm287, %v285, 0
  %vm291 = vcmask 1043456
  %v293 = vsel %vm291, %v286, 0
  %295 = vmatprep.subr.bf16.mxu0 0
  %296 = vmatpush1.bf16.msra.mxu0 %v293
  %297 = vmatprep.subr.bf16.mxu0 0
  %298 = vmatpush1.bf16.msra.mxu0 0
  %299 = vmatprep.subr.bf16.mxu0 0
  %300 = vmatpush1.bf16.msra.mxu0 0
  %301 = vmatprep.subr.bf16.mxu0 0
  %302 = vmatpush1.bf16.msra.mxu0 0
  %303 = vmatprep.subr.bf16.mxu0 0
  %304 = vmatpush1.bf16.msra.mxu0 0
  %305 = vmatprep.subr.bf16.mxu0 0
  %306 = vmatpush1.bf16.msra.mxu0 0
  %307 = vmatprep.subr.bf16.mxu0 0
  %308 = vmatpush1.bf16.msra.mxu0 0
  %309 = vmatprep.subr.bf16.mxu0 0
  %310 = vmatpush1.bf16.msra.mxu0 0
  %311 = vmatprep.subr.bf16.mxu0 0
  %312 = vmatpush1.bf16.msra.mxu0 0
  %313 = vmatprep.subr.bf16.mxu0 0
  %314 = vmatpush1.bf16.msra.mxu0 0
  %315 = vmatprep.subr.bf16.mxu0 0
  %316 = vmatpush1.bf16.msra.mxu0 0
  %317 = vmatprep.subr.bf16.mxu0 0
  %318 = vmatpush1.bf16.msra.mxu0 0
  %319 = vmatprep.subr.bf16.mxu0 0
  %320 = vmatpush1.bf16.msra.mxu0 0
  %321 = vmatprep.subr.bf16.mxu0 0
  %322 = vmatpush1.bf16.msra.mxu0 0
  %323 = vmatprep.subr.bf16.mxu0 0
  %324 = vmatpush1.bf16.msra.mxu0 0
  %325 = vmatprep.subr.bf16.mxu0 0
  %326 = vmatpush1.bf16.msra.mxu0 0
  %327 = vmatprep.mubr.bf16.mxu0 0
  %328 = vmatmul.mubr.bf16.gmra.mrb[0].mxu0 %v289
  %v329 = vpop.f32.mrb[0].mxu0
  %v330 = vadd.f32 0.0, %v329
  %v331 = vpop.f32.mrb[0].mxu0
  %v332 = vpop.f32.mrb[0].mxu0
  %v333 = vpop.f32.mrb[0].mxu0
  %334 = vdwg.mxu0
  %v335 = vpack.c.bf16 %v330, %v330
  %v337 = vsel %vm74, %v335, 0
  %339 = vmatprep.subr.bf16.mxu0 0
  %340 = vmatpush1.bf16.msra.mxu0 %v71
  %341 = vmatprep.subr.bf16.mxu0 0
  %342 = vmatpush1.bf16.msra.mxu0 0
  %343 = vmatprep.subr.bf16.mxu0 0
  %344 = vmatpush1.bf16.msra.mxu0 0
  %345 = vmatprep.subr.bf16.mxu0 0
  %346 = vmatpush1.bf16.msra.mxu0 0
  %347 = vmatprep.subr.bf16.mxu0 0
  %348 = vmatpush1.bf16.msra.mxu0 0
  %349 = vmatprep.subr.bf16.mxu0 0
  %350 = vmatpush1.bf16.msra.mxu0 0
  %351 = vmatprep.subr.bf16.mxu0 0
  %352 = vmatpush1.bf16.msra.mxu0 0
  %353 = vmatprep.subr.bf16.mxu0 0
  %354 = vmatpush1.bf16.msra.mxu0 0
  %355 = vmatprep.subr.bf16.mxu0 0
  %356 = vmatpush1.bf16.msra.mxu0 0
  %357 = vmatprep.subr.bf16.mxu0 0
  %358 = vmatpush1.bf16.msra.mxu0 0
  %359 = vmatprep.subr.bf16.mxu0 0
  %360 = vmatpush1.bf16.msra.mxu0 0
  %361 = vmatprep.subr.bf16.mxu0 0
  %362 = vmatpush1.bf16.msra.mxu0 0
  %363 = vmatprep.subr.bf16.mxu0 0
  %364 = vmatpush1.bf16.msra.mxu0 0
  %365 = vmatprep.subr.bf16.mxu0 0
  %366 = vmatpush1.bf16.msra.mxu0 0
  %367 = vmatprep.subr.bf16.mxu0 0
  %368 = vmatpush1.bf16.msra.mxu0 0
  %369 = vmatprep.subr.bf16.mxu0 0
  %370 = vmatpush1.bf16.msra.mxu0 0
  %371 = vmatprep.mubr.bf16.mxu0 0
  %372 = vmatmul.mubr.bf16.gmra.mrb[0].mxu0 %v337
  %v373 = vpop.f32.mrb[0].mxu0
  %v374 = vadd.f32 0.0, %v373
  %v375 = vpop.f32.mrb[0].mxu0
  %v376 = vpop.f32.mrb[0].mxu0
  %v377 = vpop.f32.mrb[0].mxu0
  %378 = vdwg.mxu0
  %s379 = scalar_lea.vmem %s0, 16
  %v380 = vld [vmem:[%s379] sm:$0xff]
  %v381 = vld [vmem:[%s379 + $0x8] sm:$0xff]
  %v382 = vpack.c.bf16 %v381, %v380
  %v383 = vld [vmem:[%s1 + $0x1] sm:$0x1]
  %v384 = vpack.c.bf16 %v383, %v383
  %v386 = vsel %vm74, %v384, 0
  %388 = vmatprep.subr.bf16.mxu0 0
  %389 = vmatpush1.bf16.msra.mxu0 %v382
  %390 = vmatprep.subr.bf16.mxu0 0
  %391 = vmatpush1.bf16.msra.mxu0 0
  %392 = vmatprep.subr.bf16.mxu0 0
  %393 = vmatpush1.bf16.msra.mxu0 0
  %394 = vmatprep.subr.bf16.mxu0 0
  %395 = vmatpush1.bf16.msra.mxu0 0
  %396 = vmatprep.subr.bf16.mxu0 0
  %397 = vmatpush1.bf16.msra.mxu0 0
  %398 = vmatprep.subr.bf16.mxu0 0
  %399 = vmatpush1.bf16.msra.mxu0 0
  %400 = vmatprep.subr.bf16.mxu0 0
  %401 = vmatpush1.bf16.msra.mxu0 0
  %402 = vmatprep.subr.bf16.mxu0 0
  %403 = vmatpush1.bf16.msra.mxu0 0
  %404 = vmatprep.subr.bf16.mxu0 0
  %405 = vmatpush1.bf16.msra.mxu0 0
  %406 = vmatprep.subr.bf16.mxu0 0
  %407 = vmatpush1.bf16.msra.mxu0 0
  %408 = vmatprep.subr.bf16.mxu0 0
  %409 = vmatpush1.bf16.msra.mxu0 0
  %410 = vmatprep.subr.bf16.mxu0 0
  %411 = vmatpush1.bf16.msra.mxu0 0
  %412 = vmatprep.subr.bf16.mxu0 0
  %413 = vmatpush1.bf16.msra.mxu0 0
  %414 = vmatprep.subr.bf16.mxu0 0
  %415 = vmatpush1.bf16.msra.mxu0 0
  %416 = vmatprep.subr.bf16.mxu0 0
  %417 = vmatpush1.bf16.msra.mxu0 0
  %418 = vmatprep.subr.bf16.mxu0 0
  %419 = vmatpush1.bf16.msra.mxu0 0
  %420 = vmatprep.mubr.bf16.mxu0 0
  %421 = vmatmul.mubr.bf16.gmra.mrb[0].mxu0 %v386
  %v422 = vpop.f32.mrb[0].mxu0
  %v423 = vadd.f32 0.0, %v422
  %v424 = vpop.f32.mrb[0].mxu0
  %v425 = vpop.f32.mrb[0].mxu0
  %v426 = vpop.f32.mrb[0].mxu0
  %427 = vdwg.mxu0
  %v428 = vmul.f32 %v423, 0.0625
  %v429 = vpack.c.bf16 %v428, %v428
  %430 = vmatprep.subr.bf16.mxu0 0
  %431 = vmatpush1.bf16.xpose.msra.mxu0 %v382
  %432 = vmatprep.subr.bf16.mxu0 0
  %433 = vmatpush1.bf16.xpose.msra.mxu0 0
  %434 = vmatprep.subr.bf16.mxu0 0
  %435 = vmatpush1.bf16.xpose.msra.mxu0 0
  %436 = vmatprep.subr.bf16.mxu0 0
  %437 = vmatpush1.bf16.xpose.msra.mxu0 0
  %438 = vmatprep.subr.bf16.mxu0 0
  %439 = vmatpush1.bf16.xpose.msra.mxu0 0
  %440 = vmatprep.subr.bf16.mxu0 0
  %441 = vmatpush1.bf16.xpose.msra.mxu0 0
  %442 = vmatprep.subr.bf16.mxu0 0
  %443 = vmatpush1.bf16.xpose.msra.mxu0 0
  %444 = vmatprep.subr.bf16.mxu0 0
  %445 = vmatpush1.bf16.xpose.msra.mxu0 0
  %446 = vmatprep.subr.bf16.mxu0 0
  %447 = vmatpush1.bf16.xpose.msra.mxu0 0
  %448 = vmatprep.subr.bf16.mxu0 0
  %449 = vmatpush1.bf16.xpose.msra.mxu0 0
  %450 = vmatprep.subr.bf16.mxu0 0
  %451 = vmatpush1.bf16.xpose.msra.mxu0 0
  %452 = vmatprep.subr.bf16.mxu0 0
  %453 = vmatpush1.bf16.xpose.msra.mxu0 0
  %454 = vmatprep.subr.bf16.mxu0 0
  %455 = vmatpush1.bf16.xpose.msra.mxu0 0
  %456 = vmatprep.subr.bf16.mxu0 0
  %457 = vmatpush1.bf16.xpose.msra.mxu0 0
  %458 = vmatprep.subr.bf16.mxu0 0
  %459 = vmatpush1.bf16.xpose.msra.mxu0 0
  %460 = vmatprep.subr.bf16.mxu0 0
  %461 = vmatpush1.bf16.xpose.msra.mxu0 0
  %462 = vmatprep.mubr.bf16.mxu0 0
  %463 = vmatmul.mubr.bf16.gmra.mrb[0].mxu0 %v429
  %v464 = vpop.f32.mrb[0].mxu0
  %v465 = vadd.f32 0.0, %v464
  %v466 = vpop.f32.mrb[0].mxu0
  %v467 = vpop.f32.mrb[0].mxu0
  %v468 = vpop.f32.mrb[0].mxu0
  %469 = vdwg.mxu0
  %v470 = vlaneseq
  %v471 = vshrl.u32 %v470, 7
  %v472 = vsub.s32 0, %v471
  %v473 = vrot.slane %v465, %v472
  %v474 = vadd.f32 %v473, %v32
  %v475 = vmul.f32 %v474, 1.442695
  %v476 = vpow.pop %v475
  %v477 = vsel %vm74, %v476, 0.0
  %478 = vadd.xlane.f32.xlu0 %v477
  %v479 = vpop.xlane.xlu0 %478
  %v480 = vrcp.pop %v479
  %v481 = vmul.f32 %v476, %v480
  %v482 = vmul.f32 %v380, %v380
  %v483 = vmul.f32 %v381, %v381
  %484 = vadd.xlane.f32.xlu0 %v482
  %v485 = vpop.xlane.xlu0 %484
  %486 = vadd.xlane.f32.xlu0 %v483
  %v487 = vpop.xlane.xlu0 %486
  %v488 = vadd.f32 %v485, 1e-12
  %v489 = vadd.f32 %v487, 1e-12
  %v490 = vrsqrt.pop %v488
  %v491 = vrsqrt.pop %v489
  %v492 = vmul.f32 %v380, %v490
  %v493 = vmul.f32 %v381, %v491
  %v494 = vadd.f32 %v492, %v493
  %v495 = vrot.slane %v494, 4
  %v496 = vadd.f32 %v494, %v495
  %v497 = vrot.slane %v496, 2
  %v498 = vadd.f32 %v496, %v497
  %v499 = vrot.slane %v498, 1
  %v500 = vadd.f32 %v498, %v499
  %v501 = vmul.f32 %v500, %v191
  %v502 = vpack.c.bf16 %v501, %v501
  %v503 = vpack.c.bf16 %v493, %v492
  %504 = vmatprep.subr.bf16.mxu0 0
  %505 = vmatpush1.bf16.xpose.msra.mxu0 %v503
  %506 = vmatprep.subr.bf16.mxu0 0
  %507 = vmatpush1.bf16.xpose.msra.mxu0 0
  %508 = vmatprep.subr.bf16.mxu0 0
  %509 = vmatpush1.bf16.xpose.msra.mxu0 0
  %510 = vmatprep.subr.bf16.mxu0 0
  %511 = vmatpush1.bf16.xpose.msra.mxu0 0
  %512 = vmatprep.subr.bf16.mxu0 0
  %513 = vmatpush1.bf16.xpose.msra.mxu0 0
  %514 = vmatprep.subr.bf16.mxu0 0
  %515 = vmatpush1.bf16.xpose.msra.mxu0 0
  %516 = vmatprep.subr.bf16.mxu0 0
  %517 = vmatpush1.bf16.xpose.msra.mxu0 0
  %518 = vmatprep.subr.bf16.mxu0 0
  %519 = vmatpush1.bf16.xpose.msra.mxu0 0
  %520 = vmatprep.subr.bf16.mxu0 0
  %521 = vmatpush1.bf16.xpose.msra.mxu0 0
  %522 = vmatprep.subr.bf16.mxu0 0
  %523 = vmatpush1.bf16.xpose.msra.mxu0 0
  %524 = vmatprep.subr.bf16.mxu0 0
  %525 = vmatpush1.bf16.xpose.msra.mxu0 0
  %526 = vmatprep.subr.bf16.mxu0 0
  %527 = vmatpush1.bf16.xpose.msra.mxu0 0
  %528 = vmatprep.subr.bf16.mxu0 0
  %529 = vmatpush1.bf16.xpose.msra.mxu0 0
  %530 = vmatprep.subr.bf16.mxu0 0
  %531 = vmatpush1.bf16.xpose.msra.mxu0 0
  %532 = vmatprep.subr.bf16.mxu0 0
  %533 = vmatpush1.bf16.xpose.msra.mxu0 0
  %534 = vmatprep.subr.bf16.mxu0 0
  %535 = vmatpush1.bf16.xpose.msra.mxu0 0
  %536 = vmatprep.mubr.bf16.mxu0 0
  %537 = vmatmul.mubr.bf16.gmra.mrb[0].mxu0 %v502
  %v538 = vpop.f32.mrb[0].mxu0
  %v539 = vadd.f32 0.0, %v538
  %v540 = vpop.f32.mrb[0].mxu0
  %v541 = vpop.f32.mrb[0].mxu0
  %v542 = vpop.f32.mrb[0].mxu0
  %543 = vdwg.mxu0
  %v544 = vpack.c.bf16 %v539, %v539
  %v546 = vsel %vm74, %v544, 0
  %548 = vmatprep.subr.bf16.mxu0 0
  %549 = vmatpush1.bf16.msra.mxu0 %v240
  %550 = vmatprep.subr.bf16.mxu0 0
  %551 = vmatpush1.bf16.msra.mxu0 0
  %552 = vmatprep.subr.bf16.mxu0 0
  %553 = vmatpush1.bf16.msra.mxu0 0
  %554 = vmatprep.subr.bf16.mxu0 0
  %555 = vmatpush1.bf16.msra.mxu0 0
  %556 = vmatprep.subr.bf16.mxu0 0
  %557 = vmatpush1.bf16.msra.mxu0 0
  %558 = vmatprep.subr.bf16.mxu0 0
  %559 = vmatpush1.bf16.msra.mxu0 0
  %560 = vmatprep.subr.bf16.mxu0 0
  %561 = vmatpush1.bf16.msra.mxu0 0
  %562 = vmatprep.subr.bf16.mxu0 0
  %563 = vmatpush1.bf16.msra.mxu0 0
  %564 = vmatprep.subr.bf16.mxu0 0
  %565 = vmatpush1.bf16.msra.mxu0 0
  %566 = vmatprep.subr.bf16.mxu0 0
  %567 = vmatpush1.bf16.msra.mxu0 0
  %568 = vmatprep.subr.bf16.mxu0 0
  %569 = vmatpush1.bf16.msra.mxu0 0
  %570 = vmatprep.subr.bf16.mxu0 0
  %571 = vmatpush1.bf16.msra.mxu0 0
  %572 = vmatprep.subr.bf16.mxu0 0
  %573 = vmatpush1.bf16.msra.mxu0 0
  %574 = vmatprep.subr.bf16.mxu0 0
  %575 = vmatpush1.bf16.msra.mxu0 0
  %576 = vmatprep.subr.bf16.mxu0 0
  %577 = vmatpush1.bf16.msra.mxu0 0
  %578 = vmatprep.subr.bf16.mxu0 0
  %579 = vmatpush1.bf16.msra.mxu0 0
  %580 = vmatprep.mubr.bf16.mxu0 0
  %581 = vmatmul.mubr.bf16.gmra.mrb[0].mxu0 %v546
  %v582 = vpop.f32.mrb[0].mxu0
  %v583 = vadd.f32 0.0, %v582
  %v584 = vpop.f32.mrb[0].mxu0
  %v585 = vpop.f32.mrb[0].mxu0
  %v586 = vpop.f32.mrb[0].mxu0
  %587 = vdwg.mxu0
  %v588 = vpack.c.bf16 %v583, %v583
  %v589 = vpack.c.bf16 %v481, %v481
  %v591 = vsel %vm287, %v588, 0
  %v594 = vsel %vm291, %v589, 0
  %596 = vmatprep.subr.bf16.mxu0 0
  %597 = vmatpush1.bf16.msra.mxu0 %v594
  %598 = vmatprep.subr.bf16.mxu0 0
  %599 = vmatpush1.bf16.msra.mxu0 0
  %600 = vmatprep.subr.bf16.mxu0 0
  %601 = vmatpush1.bf16.msra.mxu0 0
  %602 = vmatprep.subr.bf16.mxu0 0
  %603 = vmatpush1.bf16.msra.mxu0 0
  %604 = vmatprep.subr.bf16.mxu0 0
  %605 = vmatpush1.bf16.msra.mxu0 0
  %606 = vmatprep.subr.bf16.mxu0 0
  %607 = vmatpush1.bf16.msra.mxu0 0
  %608 = vmatprep.subr.bf16.mxu0 0
  %609 = vmatpush1.bf16.msra.mxu0 0
  %610 = vmatprep.subr.bf16.mxu0 0
  %611 = vmatpush1.bf16.msra.mxu0 0
  %612 = vmatprep.subr.bf16.mxu0 0
  %613 = vmatpush1.bf16.msra.mxu0 0
  %614 = vmatprep.subr.bf16.mxu0 0
  %615 = vmatpush1.bf16.msra.mxu0 0
  %616 = vmatprep.subr.bf16.mxu0 0
  %617 = vmatpush1.bf16.msra.mxu0 0
  %618 = vmatprep.subr.bf16.mxu0 0
  %619 = vmatpush1.bf16.msra.mxu0 0
  %620 = vmatprep.subr.bf16.mxu0 0
  %621 = vmatpush1.bf16.msra.mxu0 0
  %622 = vmatprep.subr.bf16.mxu0 0
  %623 = vmatpush1.bf16.msra.mxu0 0
  %624 = vmatprep.subr.bf16.mxu0 0
  %625 = vmatpush1.bf16.msra.mxu0 0
  %626 = vmatprep.subr.bf16.mxu0 0
  %627 = vmatpush1.bf16.msra.mxu0 0
  %628 = vmatprep.mubr.bf16.mxu0 0
  %629 = vmatmul.mubr.bf16.gmra.mrb[0].mxu0 %v591
  %v630 = vpop.f32.mrb[0].mxu0
  %v631 = vadd.f32 0.0, %v630
  %v632 = vpop.f32.mrb[0].mxu0
  %v633 = vpop.f32.mrb[0].mxu0
  %v634 = vpop.f32.mrb[0].mxu0
  %635 = vdwg.mxu0
  %v636 = vpack.c.bf16 %v631, %v631
  %v638 = vsel %vm74, %v636, 0
  %640 = vmatprep.subr.bf16.mxu0 0
  %641 = vmatpush1.bf16.msra.mxu0 %v382
  %642 = vmatprep.subr.bf16.mxu0 0
  %643 = vmatpush1.bf16.msra.mxu0 0
  %644 = vmatprep.subr.bf16.mxu0 0
  %645 = vmatpush1.bf16.msra.mxu0 0
  %646 = vmatprep.subr.bf16.mxu0 0
  %647 = vmatpush1.bf16.msra.mxu0 0
  %648 = vmatprep.subr.bf16.mxu0 0
  %649 = vmatpush1.bf16.msra.mxu0 0
  %650 = vmatprep.subr.bf16.mxu0 0
  %651 = vmatpush1.bf16.msra.mxu0 0
  %652 = vmatprep.subr.bf16.mxu0 0
  %653 = vmatpush1.bf16.msra.mxu0 0
  %654 = vmatprep.subr.bf16.mxu0 0
  %655 = vmatpush1.bf16.msra.mxu0 0
  %656 = vmatprep.subr.bf16.mxu0 0
  %657 = vmatpush1.bf16.msra.mxu0 0
  %658 = vmatprep.subr.bf16.mxu0 0
  %659 = vmatpush1.bf16.msra.mxu0 0
  %660 = vmatprep.subr.bf16.mxu0 0
  %661 = vmatpush1.bf16.msra.mxu0 0
  %662 = vmatprep.subr.bf16.mxu0 0
  %663 = vmatpush1.bf16.msra.mxu0 0
  %664 = vmatprep.subr.bf16.mxu0 0
  %665 = vmatpush1.bf16.msra.mxu0 0
  %666 = vmatprep.subr.bf16.mxu0 0
  %667 = vmatpush1.bf16.msra.mxu0 0
  %668 = vmatprep.subr.bf16.mxu0 0
  %669 = vmatpush1.bf16.msra.mxu0 0
  %670 = vmatprep.subr.bf16.mxu0 0
  %671 = vmatpush1.bf16.msra.mxu0 0
  %672 = vmatprep.mubr.bf16.mxu0 0
  %673 = vmatmul.mubr.bf16.gmra.mrb[0].mxu0 %v638
  %v674 = vpop.f32.mrb[0].mxu0
  %v675 = vadd.f32 0.0, %v674
  %v676 = vpop.f32.mrb[0].mxu0
  %v677 = vpop.f32.mrb[0].mxu0
  %v678 = vpop.f32.mrb[0].mxu0
  %679 = vdwg.mxu0
  %v681 = vrot.slane %v675, 7
  %vm683 = vcmask 1040384
  %v684 = vsel %vm683, %v374, %v681
  %v685 = vpack.c.bf16 %v684, %v684
  %v687 = vrot.slane %v380, 7
  %v689 = vsel %vm683, %v69, %v687
  %v690 = vpack.c.bf16 %v689, %v689
  %v692 = vlaneseq
  %v693 = vshrl.u32 %v692, 7
  %v694 = vsub.s32 0, %v693
  %v695 = vrot.slane %v51, %v694
  %v713 = vunpack.c.l.b16 %v35
  %v714 = vunpack.c.l.b16 %v36
  %v715 = vunpack.c.l.b16 %v37
  %v716 = vunpack.c.l.b16 %v38
  %v717 = vunpack.c.l.b16 %v39
  %v718 = vunpack.c.l.b16 %v40
  %v719 = vunpack.c.l.b16 %v41
  %v720 = vunpack.c.l.b16 %v42
  %v721 = vunpack.c.l.b16 %v43
  %v722 = vunpack.c.l.b16 %v44
  %v723 = vunpack.c.l.b16 %v45
  %v724 = vunpack.c.l.b16 %v46
  %v725 = vunpack.c.l.b16 %v47
  %v726 = vunpack.c.l.b16 %v48
  %v727 = vunpack.c.l.b16 %v49
  %v728 = vunpack.c.l.b16 %v50
  %v729 = vpack.c.b16 %v714, %v713
  %v730 = vpack.c.b16 %v716, %v715
  %v731 = vpack.c.b16 %v718, %v717
  %v732 = vpack.c.b16 %v720, %v719
  %v733 = vpack.c.b16 %v722, %v721
  %v734 = vpack.c.b16 %v724, %v723
  %v735 = vpack.c.b16 %v726, %v725
  %v736 = vpack.c.b16 %v728, %v727
  %745 = vmatprep.subr.bf16.mxu0 0
  %746 = vmatpush1.bf16.msra.mxu0 %v729
  %747 = vmatprep.subr.bf16.mxu0 0
  %748 = vmatpush1.bf16.msra.mxu0 %v730
  %749 = vmatprep.subr.bf16.mxu0 0
  %750 = vmatpush1.bf16.msra.mxu0 %v731
  %751 = vmatprep.subr.bf16.mxu0 0
  %752 = vmatpush1.bf16.msra.mxu0 %v732
  %753 = vmatprep.subr.bf16.mxu0 0
  %754 = vmatpush1.bf16.msra.mxu0 %v733
  %755 = vmatprep.subr.bf16.mxu0 0
  %756 = vmatpush1.bf16.msra.mxu0 %v734
  %757 = vmatprep.subr.bf16.mxu0 0
  %758 = vmatpush1.bf16.msra.mxu0 %v735
  %759 = vmatprep.subr.bf16.mxu0 0
  %760 = vmatpush1.bf16.msra.mxu0 %v736
  %761 = vmatprep.subr.bf16.mxu0 0
  %762 = vmatpush1.bf16.msra.mxu0 0
  %763 = vmatprep.subr.bf16.mxu0 0
  %764 = vmatpush1.bf16.msra.mxu0 0
  %765 = vmatprep.subr.bf16.mxu0 0
  %766 = vmatpush1.bf16.msra.mxu0 0
  %767 = vmatprep.subr.bf16.mxu0 0
  %768 = vmatpush1.bf16.msra.mxu0 0
  %769 = vmatprep.subr.bf16.mxu0 0
  %770 = vmatpush1.bf16.msra.mxu0 0
  %771 = vmatprep.subr.bf16.mxu0 0
  %772 = vmatpush1.bf16.msra.mxu0 0
  %773 = vmatprep.subr.bf16.mxu0 0
  %774 = vmatpush1.bf16.msra.mxu0 0
  %775 = vmatprep.subr.bf16.mxu0 0
  %776 = vmatpush1.bf16.msra.mxu0 0
  %777 = vmatprep.mubr.bf16.mxu0 0
  %778 = vmatmul.mubr.bf16.gmra.mrb[0].mxu0 %v685
  %v779 = vpop.f32.mrb[0].mxu0
  %v780 = vadd.f32 %v695, %v779
  %v781 = vpop.f32.mrb[0].mxu0
  %v782 = vpop.f32.mrb[0].mxu0
  %v783 = vpop.f32.mrb[0].mxu0
  %784 = vdwg.mxu0
  %vm785 = vcmask 517120
  %786 = vst.msk [vmem:[%s8] sm:$0x3] %vm785, %v780
  %v788 = vlaneseq
  %v789 = vshrl.u32 %v788, 7
  %v790 = vsub.s32 0, %v789
  %v791 = vrot.slane %v68, %v790
  %v809 = vunpack.c.l.b16 %v52
  %v810 = vunpack.c.l.b16 %v53
  %v811 = vunpack.c.l.b16 %v54
  %v812 = vunpack.c.l.b16 %v55
  %v813 = vunpack.c.l.b16 %v56
  %v814 = vunpack.c.l.b16 %v57
  %v815 = vunpack.c.l.b16 %v58
  %v816 = vunpack.c.l.b16 %v59
  %v817 = vunpack.c.l.b16 %v60
  %v818 = vunpack.c.l.b16 %v61
  %v819 = vunpack.c.l.b16 %v62
  %v820 = vunpack.c.l.b16 %v63
  %v821 = vunpack.c.l.b16 %v64
  %v822 = vunpack.c.l.b16 %v65
  %v823 = vunpack.c.l.b16 %v66
  %v824 = vunpack.c.l.b16 %v67
  %v825 = vpack.c.b16 %v810, %v809
  %v826 = vpack.c.b16 %v812, %v811
  %v827 = vpack.c.b16 %v814, %v813
  %v828 = vpack.c.b16 %v816, %v815
  %v829 = vpack.c.b16 %v818, %v817
  %v830 = vpack.c.b16 %v820, %v819
  %v831 = vpack.c.b16 %v822, %v821
  %v832 = vpack.c.b16 %v824, %v823
  %841 = vmatprep.subr.bf16.mxu0 0
  %842 = vmatpush1.bf16.msra.mxu0 %v825
  %843 = vmatprep.subr.bf16.mxu0 0
  %844 = vmatpush1.bf16.msra.mxu0 %v826
  %845 = vmatprep.subr.bf16.mxu0 0
  %846 = vmatpush1.bf16.msra.mxu0 %v827
  %847 = vmatprep.subr.bf16.mxu0 0
  %848 = vmatpush1.bf16.msra.mxu0 %v828
  %849 = vmatprep.subr.bf16.mxu0 0
  %850 = vmatpush1.bf16.msra.mxu0 %v829
  %851 = vmatprep.subr.bf16.mxu0 0
  %852 = vmatpush1.bf16.msra.mxu0 %v830
  %853 = vmatprep.subr.bf16.mxu0 0
  %854 = vmatpush1.bf16.msra.mxu0 %v831
  %855 = vmatprep.subr.bf16.mxu0 0
  %856 = vmatpush1.bf16.msra.mxu0 %v832
  %857 = vmatprep.subr.bf16.mxu0 0
  %858 = vmatpush1.bf16.msra.mxu0 0
  %859 = vmatprep.subr.bf16.mxu0 0
  %860 = vmatpush1.bf16.msra.mxu0 0
  %861 = vmatprep.subr.bf16.mxu0 0
  %862 = vmatpush1.bf16.msra.mxu0 0
  %863 = vmatprep.subr.bf16.mxu0 0
  %864 = vmatpush1.bf16.msra.mxu0 0
  %865 = vmatprep.subr.bf16.mxu0 0
  %866 = vmatpush1.bf16.msra.mxu0 0
  %867 = vmatprep.subr.bf16.mxu0 0
  %868 = vmatpush1.bf16.msra.mxu0 0
  %869 = vmatprep.subr.bf16.mxu0 0
  %870 = vmatpush1.bf16.msra.mxu0 0
  %871 = vmatprep.subr.bf16.mxu0 0
  %872 = vmatpush1.bf16.msra.mxu0 0
  %873 = vmatprep.mubr.bf16.mxu0 0
  %874 = vmatmul.mubr.bf16.gmra.mrb[0].mxu0 %v690
  %v875 = vpop.f32.mrb[0].mxu0
  %v876 = vadd.f32 %v791, %v875
  %v877 = vpop.f32.mrb[0].mxu0
  %v878 = vpop.f32.mrb[0].mxu0
  %v879 = vpop.f32.mrb[0].mxu0
  %880 = vdwg.mxu0
  %v881 = vtanh.pop %v876
  %882 = vst [vmem:[%s9] sm:$0x3] %v881
  // Predicated region
  $region34: #{feature_part_forward.1} parent=0 // pred_check
    _
  $region35: #{feature_part_forward.1} parent=0 // pred_check_branch
    %884 = sbr.rel (0) target = $region37
  $region36: #{feature_part_forward.1} parent=0 // pred_region
    _
  $region37: #{feature_part_forward.1} parent=0 // pred_fallthru
    _
  // Predicated region
  $region38: #{feature_part_forward.1} parent=0 // pred_check
    _
  $region39: #{feature_part_forward.1} parent=0 // pred_check_branch
    %886 = sbr.rel (0) target = $region41
  $region40: #{feature_part_forward.1} parent=0 // pred_region
    _
  $region41: #{feature_part_forward.1} parent=0 // pred_fallthru
    _
  // Predicated region
  $region42: #{feature_part_forward.1} parent=0 // pred_check
    _
  $region43: #{feature_part_forward.1} parent=0 // pred_check_branch
    %888 = sbr.rel (0) target = $region45
  $region44: #{feature_part_forward.1} parent=0 // pred_region
    _
  $region45: #{feature_part_forward.1} parent=0 // pred_fallthru
    _
  // Predicated region
  $region46: #{feature_part_forward.1} parent=0 // pred_check
    _
  $region47: #{feature_part_forward.1} parent=0 // pred_check_branch
    %890 = sbr.rel (0) target = $region49
  $region48: #{feature_part_forward.1} parent=0 // pred_region
    _
  $region49: #{feature_part_forward.1} parent=0 // pred_fallthru
    _

</llo_original>
